<compile_context>
chip_gen: v6e
topology: v6e:2x2x1
jax: 0.10.0
libtpu: 0.0.40
codegen_flags: <defaults>
</compile_context>

<pallas_src>
import functools

import jax
import jax.numpy as jnp
from jax.experimental import pallas as pl
from jax.experimental.pallas import tpu as pltpu


def _cos_bce_partial_kernel(x_ref, y_ref, t_ref, o_ref, *, block_rows, batch):
    """One batch tile: cosine-sim logits -> BCE-with-logits -> per-block partial sum."""
    i = pl.program_id(0)

    x = x_ref[...].astype(jnp.float32)      # (tb, D)
    y = y_ref[...].astype(jnp.float32)      # (tb, D)
    t = t_ref[...]                           # (1, tb)  lane-dense f32 labels

    eps = jnp.float32(1e-8)

    # --- cosine similarity along the feature axis (PyTorch dim=1, per-norm eps clamp) ---
    dot = jnp.sum(x * y, axis=-1, keepdims=True)    # (tb, 1)
    sx = jnp.sum(x * x, axis=-1, keepdims=True)     # (tb, 1)
    sy = jnp.sum(y * y, axis=-1, keepdims=True)     # (tb, 1)
    inv = (jax.lax.rsqrt(jnp.maximum(sx, eps * eps)) *
           jax.lax.rsqrt(jnp.maximum(sy, eps * eps)))     # 1/(max(|x|,eps)*max(|y|,eps))
    z = dot * inv                                    # (tb, 1) logits, |z| <= 1 for real rows

    # Mask rows past the true batch size (partial last block reads unspecified data).
    rows = i * block_rows + jax.lax.broadcasted_iota(jnp.int32, z.shape, 0)
    valid = rows < batch
    z = jnp.where(valid, z, 0.0)

    # --- BCE with logits (numerically stable), split into label-free and label terms ---
    # sum_r [max(z,0) + log1p(exp(-|z|))]  over valid rows   (softplus part)
    sp = jnp.maximum(z, 0.0) + jnp.log1p(jnp.exp(-jnp.abs(z)))
    sp = jnp.where(valid, sp, 0.0)
    part1 = jnp.sum(sp)                               # scalar

    # sum_r t_r * z_r : lane-dense t (1, tb) contracted against sublane-major z (tb, 1)
    # on the otherwise-idle MXU (padded rows have z == 0, so they contribute nothing).
    part2 = jnp.dot(t, z, preferred_element_type=jnp.float32)   # (1, 1)

    o_ref[...] = part1 - part2                        # (1, 1) partial BCE sum


def _plan_block_rows(batch, feat, itemsize):
    """Pick tb from a lane-padded VMEM budget; keep >= 2 blocks; round to sublane packing."""
    sub = max(8, 32 // itemsize)                 # 8 f32, 16 bf16, 32 int8
    lanes = pl.cdiv(feat, 128) * 128             # lane-padded feature width in VMEM
    try:
        cap = int(getattr(pltpu.get_tpu_info(), "vmem_capacity_bytes", 64 << 20))
    except Exception:  # pragma: no cover - conservative fallback (works on all gens)
        cap = 64 << 20
    budget = (cap * 3) // 4                      # v7x: ~48 of 64 MiB; v5e/v6e: ~96 of 128 MiB
    slack = 4 << 20                              # compiler / internal scratch headroom

    per_row = (2 * 2 * lanes * itemsize          # x, y: 2 inputs x 2 pipeline buffers
               + 4 * lanes * 4                   # f32 elementwise temporaries in VMEM
               + 2 * 8 * 4)                      # labels (1,tb) block -> (8,~tb) x 2 buffers
    tb_budget = max(sub, ((budget - slack) // per_row) // sub * sub)
    # Keep >= 2 grid blocks so both v7x TensorCores get work on the "parallel" axis.
    tb_half = max(sub, pl.cdiv(pl.cdiv(batch, 2), sub) * sub)
    tb = int(min(tb_budget, tb_half))
    return tb, int(cap), int(budget)


def cosine_similarity_bce_with_logits_loss(input_vector, target_vector, target_labels,
                                           *, block_rows=None):
    """input_vector, target_vector: (B, D); target_labels: (B,). Returns scalar f32 loss."""
    B, D = input_vector.shape
    itemsize = jnp.dtype(input_vector.dtype).itemsize

    tb, cap, budget = _plan_block_rows(B, D, itemsize)
    if block_rows is not None:
        tb = int(block_rows)                      # must be a multiple of the sublane packing

    num_blocks = pl.cdiv(B, tb)
    b_pad = num_blocks * tb

    # Lane-dense labels: (num_blocks, tb), zero-padded past B (cheap: B*4 bytes).
    labels = jnp.pad(target_labels.astype(jnp.float32), (0, b_pad - B)).reshape(num_blocks, tb)

    vmem_limit = int(min(cap, max(32 << 20, budget + (8 << 20))))

    cost = pl.CostEstimate(
        flops=int(8 * B * D),
        transcendentals=int(4 * B),
        bytes_accessed=int(2 * B * D * itemsize + 4 * b_pad + 4 * num_blocks),
    )

    kernel = functools.partial(_cos_bce_partial_kernel, block_rows=tb, batch=B)

    partials = pl.pallas_call(
        kernel,
        out_shape=jax.ShapeDtypeStruct((num_blocks, 1), jnp.float32),
        grid=(num_blocks,),
        in_specs=[
            pl.BlockSpec((tb, D), lambda i: (i, 0)),     # x tile (partial last block OK)
            pl.BlockSpec((tb, D), lambda i: (i, 0)),     # y tile
            pl.BlockSpec((1, tb), lambda i: (i, 0)),     # lane-dense labels row
        ],
        out_specs=pl.BlockSpec((1, 1), lambda i: (i, 0)),
        compiler_params=pltpu.CompilerParams(
            dimension_semantics=("parallel",),
            vmem_limit_bytes=vmem_limit,
        ),
        cost_estimate=cost,
    )(input_vector, target_vector, labels)

    return jnp.sum(partials) / jnp.float32(B)


def _reference_loss(x, y, labels):
    """Pure-JAX reference matching PyTorch 2.x cosine_similarity + BCEWithLogitsLoss."""
    x = x.astype(jnp.float32)
    y = y.astype(jnp.float32)
    nx = jnp.maximum(jnp.linalg.norm(x, axis=1), 1e-8)
    ny = jnp.maximum(jnp.linalg.norm(y, axis=1), 1e-8)
    z = jnp.sum(x * y, axis=1) / (nx * ny)
    t = labels.astype(jnp.float32)
    return jnp.mean(jnp.maximum(z, 0.0) - z * t + jnp.log1p(jnp.exp(-jnp.abs(z))))


if __name__ == "__main__":
    key = jax.random.PRNGKey(0)
    k1, k2, k3, k4, k5, k6, k7, k8, k9 = jax.random.split(key, 9)

    # Check 1: small (B, D) matching the module's forward.
    B, D = 8, 32
    x1 = jax.random.normal(k1, (B, D), dtype=jnp.float32)
    y1 = jax.random.normal(k2, (B, D), dtype=jnp.float32)
    t1 = (jax.random.uniform(k3, (B,)) > 0.5).astype(jnp.float32)
    out1 = cosine_similarity_bce_with_logits_loss(x1, y1, t1)
    jax.block_until_ready(out1)
    ref1 = _reference_loss(x1, y1, t1)
    assert jnp.allclose(out1, ref1, rtol=1e-5, atol=1e-5), (out1, ref1)

    # Check 2: batch not a multiple of the tile/sublane size (partial block + masking).
    B2, D2 = 13, 48
    x2 = jax.random.normal(k4, (B2, D2), dtype=jnp.float32)
    y2 = jax.random.normal(k5, (B2, D2), dtype=jnp.float32)
    t2 = (jax.random.uniform(k6, (B2,)) > 0.5).astype(jnp.float32)
    out2 = cosine_similarity_bce_with_logits_loss(x2, y2, t2)
    jax.block_until_ready(out2)
    ref2 = _reference_loss(x2, y2, t2)
    assert jnp.allclose(out2, ref2, rtol=1e-5, atol=1e-5), (out2, ref2)

    # Check 3: forced multi-block grid (parallel axis, lane-dense label blocks,
    # out-of-bounds masking on the final block).
    B3, D3 = 200, 32
    x3 = jax.random.normal(k7, (B3, D3), dtype=jnp.float32)
    y3 = jax.random.normal(k8, (B3, D3), dtype=jnp.float32)
    t3 = (jax.random.uniform(k9, (B3,)) > 0.5).astype(jnp.float32)
    out3 = cosine_similarity_bce_with_logits_loss(x3, y3, t3, block_rows=64)
    jax.block_until_ready(out3)
    ref3 = _reference_loss(x3, y3, t3)
    assert jnp.allclose(out3, ref3, rtol=1e-5, atol=1e-5), (out3, ref3)

    print("KERNEL_OK")
</pallas_src>

<mosaic_0001>
module attributes {stable_mosaic.version = 11 : i64} {
  func.func @_cos_bce_partial_kernel(%arg0: i32, %arg1: memref<8x32xf32, #tpu.memory_space<vmem>>, %arg2: memref<8x32xf32, #tpu.memory_space<vmem>>, %arg3: memref<1x8xf32, #tpu.memory_space<vmem>>, %arg4: memref<1x1xf32, #tpu.memory_space<vmem>>) attributes {dimension_semantics = [#tpu.dimension_semantics<parallel>], iteration_bounds = array<i64: 1>, scalar_prefetch = 0 : i64, scratch_operands = 0 : i64, tpu.core_type = #tpu.core_type<tc>, window_params = [{transform_indices = @transform_0, window_bounds = array<i64: 8, 32>}, {transform_indices = @transform_1, window_bounds = array<i64: 8, 32>}, {transform_indices = @transform_2, window_bounds = array<i64: 1, 8>}, {transform_indices = @transform_3, window_bounds = array<i64: 1, 1>}]} {
    %c0 = arith.constant 0 : index
    %c0_0 = arith.constant 0 : index
    %0 = vector.load %arg1[%c0, %c0_0] : memref<8x32xf32, #tpu.memory_space<vmem>>, vector<8x32xf32>
    %c0_1 = arith.constant 0 : index
    %c0_2 = arith.constant 0 : index
    %1 = vector.load %arg2[%c0_1, %c0_2] : memref<8x32xf32, #tpu.memory_space<vmem>>, vector<8x32xf32>
    %c0_3 = arith.constant 0 : index
    %c0_4 = arith.constant 0 : index
    %2 = vector.load %arg3[%c0_3, %c0_4] : memref<1x8xf32, #tpu.memory_space<vmem>>, vector<1x8xf32>
    %3 = arith.mulf %0, %1 : vector<8x32xf32>
    %cst = arith.constant dense<0.000000e+00> : vector<8xf32>
    %4 = vector.multi_reduction <add>, %3, %cst [1] : vector<8x32xf32> to vector<8xf32>
    %5 = vector.shape_cast %4 : vector<8xf32> to vector<8x1xf32>
    %6 = arith.mulf %0, %0 : vector<8x32xf32>
    %cst_5 = arith.constant dense<0.000000e+00> : vector<8xf32>
    %7 = vector.multi_reduction <add>, %6, %cst_5 [1] : vector<8x32xf32> to vector<8xf32>
    %8 = vector.shape_cast %7 : vector<8xf32> to vector<8x1xf32>
    %9 = arith.mulf %1, %1 : vector<8x32xf32>
    %cst_6 = arith.constant dense<0.000000e+00> : vector<8xf32>
    %10 = vector.multi_reduction <add>, %9, %cst_6 [1] : vector<8x32xf32> to vector<8xf32>
    %11 = vector.shape_cast %10 : vector<8xf32> to vector<8x1xf32>
    %cst_7 = arith.constant 9.99999993E-9 : f32
    %cst_8 = arith.constant 9.99999993E-9 : f32
    %12 = arith.mulf %cst_7, %cst_8 : f32
    %13 = vector.broadcast %12 : f32 to vector<8x1xf32>
    %14 = arith.maximumf %8, %13 : vector<8x1xf32>
    %15 = math.rsqrt %14 : vector<8x1xf32>
    %cst_9 = arith.constant 9.99999993E-9 : f32
    %cst_10 = arith.constant 9.99999993E-9 : f32
    %16 = arith.mulf %cst_9, %cst_10 : f32
    %17 = vector.broadcast %16 : f32 to vector<8x1xf32>
    %18 = arith.maximumf %11, %17 : vector<8x1xf32>
    %19 = math.rsqrt %18 : vector<8x1xf32>
    %20 = arith.mulf %15, %19 : vector<8x1xf32>
    %21 = arith.mulf %5, %20 : vector<8x1xf32>
    %c8_i32 = arith.constant 8 : i32
    %22 = arith.muli %arg0, %c8_i32 : i32
    %23 = tpu.iota {dimensions = array<i32: 0>} : vector<8x1xi32>
    %24 = vector.broadcast %22 : i32 to vector<8x1xi32>
    %25 = arith.addi %24, %23 : vector<8x1xi32>
    %c8_i32_11 = arith.constant 8 : i32
    %26 = vector.broadcast %c8_i32_11 : i32 to vector<8x1xi32>
    %27 = arith.cmpi slt, %25, %26 : vector<8x1xi32>
    %cst_12 = arith.constant 0.000000e+00 : f32
    %28 = vector.broadcast %cst_12 : f32 to vector<8x1xf32>
    %29 = arith.select %27, %21, %28 : vector<8x1xi1>, vector<8x1xf32>
    %cst_13 = arith.constant 0.000000e+00 : f32
    %30 = vector.broadcast %cst_13 : f32 to vector<8x1xf32>
    %31 = arith.maximumf %29, %30 : vector<8x1xf32>
    %32 = math.absf %29 : vector<8x1xf32>
    %cst_14 = arith.constant 0.000000e+00 : f32
    %33 = vector.broadcast %cst_14 : f32 to vector<8x1xf32>
    %34 = arith.subf %33, %32 : vector<8x1xf32>
    %35 = math.exp %34 : vector<8x1xf32>
    %36 = math.log1p %35 : vector<8x1xf32>
    %37 = arith.addf %31, %36 : vector<8x1xf32>
    %cst_15 = arith.constant 0.000000e+00 : f32
    %38 = vector.broadcast %cst_15 : f32 to vector<8x1xf32>
    %39 = arith.select %27, %37, %38 : vector<8x1xi1>, vector<8x1xf32>
    %40 = vector.shape_cast %39 : vector<8x1xf32> to vector<1x8x1xf32>
    %cst_16 = arith.constant dense<0.000000e+00> : vector<1xf32>
    %41 = vector.multi_reduction <add>, %40, %cst_16 [1, 2] : vector<1x8x1xf32> to vector<1xf32>
    %42 = vector.shape_cast %41 : vector<1xf32> to vector<1x1x1xf32>
    %43 = vector.extract %42[0, 0, 0] : f32 from vector<1x1x1xf32>
    %cst_17 = arith.constant dense<0.000000e+00> : vector<1x1xf32>
    %44 = tpu.matmul %2, %29, %cst_17 {dimension_numbers = #tpu.dot_dimension_numbers<[1], [0], [0], [1], [0, 0, 1, 1], [], []>} : vector<1x8xf32>, vector<8x1xf32>, vector<1x1xf32> -> vector<1x1xf32>
    %45 = vector.broadcast %43 : f32 to vector<1x1xf32>
    %46 = arith.subf %45, %44 : vector<1x1xf32>
    %c0_18 = arith.constant 0 : index
    %c0_19 = arith.constant 0 : index
    %47 = vector.load %arg4[%c0_18, %c0_19] : memref<1x1xf32, #tpu.memory_space<vmem>>, vector<1x1xf32>
    tpu.vector_store %arg4[%c0_18, %c0_19], %46 {strides = array<i32>} : memref<1x1xf32, #tpu.memory_space<vmem>>, vector<1x1xf32>,
    return
  }
  func.func @transform_0(%arg0: i32) -> (i32, i32) {
    %c0_i32 = arith.constant 0 : i32
    %c0_i32_0 = arith.constant 0 : i32
    return %arg0, %c0_i32 : i32, i32
  }
  func.func @transform_1(%arg0: i32) -> (i32, i32) {
    %c0_i32 = arith.constant 0 : i32
    %c0_i32_0 = arith.constant 0 : i32
    return %arg0, %c0_i32 : i32, i32
  }
  func.func @transform_2(%arg0: i32) -> (i32, i32) {
    %c0_i32 = arith.constant 0 : i32
    %c0_i32_0 = arith.constant 0 : i32
    return %arg0, %c0_i32 : i32, i32
  }
  func.func @transform_3(%arg0: i32) -> (i32, i32) {
    %c0_i32 = arith.constant 0 : i32
    %c0_i32_0 = arith.constant 0 : i32
    return %arg0, %c0_i32 : i32, i32
  }
}

</mosaic_0001>

<llo_original>
// kernel: tpu_custom_call.1
$region0: #{tpu_custom_call.1}
  #allocation0 [shape = 'u32[]', space=smem, size = 0x4, offset = 0x4, fixed_abs, tag = 'smem constant byte address 0x4 - core index']
  #allocation1 [shape = 'u32[144,128]{1,0:T(1,128)}', space=vmem, size = 0x12000, scoped, tag = 'internal scratch']
  %s0 = inlined_call_operand.hbm [shape: f32[8,32], index: 0, kind: input, shape index: {}]
  %s1 = inlined_call_operand.hbm [shape: f32[8,32], index: 1, kind: input, shape index: {}]
  %s2 = inlined_call_operand.vmem [shape: f32[1,8], index: 2, kind: input, shape index: {}]
  %s3 = inlined_call_operand.hbm [shape: f32[1,1], index: 3, kind: output, shape index: {}]
  %s4 = sld [smem:[#allocation0]]
  $region30: #{tpu_custom_call.1} parent=0
    _
  %s6 = ssub.s32 1, %s4
  %s7 = scalar_select 0, %s6, %s4
  $region1: #{tpu_custom_call.1} parent=0
    #allocation2 [shape = 'u8[4096]{0}', space=vmem, size = 0x1000, scoped, tag = 'input window, operand 0, single buffered']
    #allocation3 [shape = 's32[1]{0}', space=sflag, size = 0x4, scoped, tag = 'scoped memory for tpu_custom_call.1']
    #allocation4 [shape = 's32[1]{0}', space=sflag, size = 0x4, scoped, tag = 'scoped memory for tpu_custom_call.1']
    #allocation5 [shape = 'u8[4096]{0}', space=vmem, size = 0x1000, scoped, tag = 'input window, operand 1, single buffered']
    #allocation6 [shape = 's32[1]{0}', space=sflag, size = 0x4, scoped, tag = 'scoped memory for tpu_custom_call.1']
    #allocation7 [shape = 'u8[512]{0}', space=vmem, size = 0x400, scoped, tag = 'output window, operand 0, single buffered']
    %8 = vsyncpa [#allocation3], 0
    %9 = vsyncpa [#allocation6], 0
    %10 = vsyncpa [#allocation4], 0
    // Predicated region
    $region2: #{tpu_custom_call.1} parent=1 // pred_check
      _
    $region3: #{tpu_custom_call.1} parent=1 // pred_check_branch
      %12 = sbr.rel (0) target = $region5
    $region4: #{tpu_custom_call.1} parent=1 // pred_region
      %s14 = ssub.s32 128, 128
      %15 = vsyncadd [#allocation3], %s14
      %s17 = sshll.u32 [#allocation2], 4
      %s18 = int_to_ptr.vmem [resolvable:$true] %s17
      %20 = dma.hbm_to_vmem [thread:$0]  %s0, 128, %s18, [#allocation3]
    $region5: #{tpu_custom_call.1} parent=1 // pred_fallthru
      _
    // Predicated region
    $region6: #{tpu_custom_call.1} parent=1 // pred_check
      _
    $region7: #{tpu_custom_call.1} parent=1 // pred_check_branch
      %22 = sbr.rel (0) target = $region9
    $region8: #{tpu_custom_call.1} parent=1 // pred_region
      %s24 = ssub.s32 128, 128
      %25 = vsyncadd [#allocation6], %s24
      %s27 = sshll.u32 [#allocation5], 4
      %s28 = int_to_ptr.vmem [resolvable:$true] %s27
      %30 = dma.hbm_to_vmem [thread:$0]  %s1, 128, %s28, [#allocation6]
    $region9: #{tpu_custom_call.1} parent=1 // pred_fallthru
      _
    // Predicated region
    $region10: #{tpu_custom_call.1} parent=1 // pred_check
      _
    $region11: #{tpu_custom_call.1} parent=1 // pred_check_branch
      %32 = sbr.rel (0) target = $region13
    $region12: #{tpu_custom_call.1} parent=1 // pred_region
      _
    $region13: #{tpu_custom_call.1} parent=1 // pred_fallthru
      _
    // Predicated region
    $region14: #{tpu_custom_call.1} parent=1 // pred_check
      _
    $region15: #{tpu_custom_call.1} parent=1 // pred_check_branch
      %34 = sbr.rel (0) target = $region17
    $region16: #{tpu_custom_call.1} parent=1 // pred_region
      %35 = dma.done [#allocation3], 128
    $region17: #{tpu_custom_call.1} parent=1 // pred_fallthru
      _
    // Predicated region
    $region18: #{tpu_custom_call.1} parent=1 // pred_check
      _
    $region19: #{tpu_custom_call.1} parent=1 // pred_check_branch
      %37 = sbr.rel (0) target = $region21
    $region20: #{tpu_custom_call.1} parent=1 // pred_region
      %38 = dma.done [#allocation6], 128
    $region21: #{tpu_custom_call.1} parent=1 // pred_fallthru
      _
    %v39 = vld [vmem:[#allocation2] sm:$0xff]
    %v40 = vld [vmem:[#allocation5] sm:$0xff]
    %v41 = vld [vmem:[%s2] sm:$0x1]
    %v42 = vmul.f32 %v39, %v40
    %vm43 = vcmask 261120
    %v44 = vsel %vm43, %v42, 0.0
    %45 = vadd.xlane.f32.xlu0 %v44
    %v46 = vpop.xlane.xlu0 %45
    %v47 = vmul.f32 %v39, %v39
    %v48 = vsel %vm43, %v47, 0.0
    %49 = vadd.xlane.f32.xlu0 %v48
    %v50 = vpop.xlane.xlu0 %49
    %v51 = vmul.f32 %v40, %v40
    %v52 = vsel %vm43, %v51, 0.0
    %53 = vadd.xlane.f32.xlu0 %v52
    %v54 = vpop.xlane.xlu0 %53
    %v55 = vmax.f32 %v50, 1e-16
    %v56 = vrsqrt.pop %v55
    %v57 = vmax.f32 %v54, 1e-16
    %v58 = vrsqrt.pop %v57
    %v59 = vmul.f32 %v56, %v58
    %v60 = vmul.f32 %v46, %v59
    %s61 = smul.u32 0, 8
    %v62 = vlaneseq
    %v63 = vshrl.u32 %v62, 7
    %v64 = vstv %s61
    %v65 = vadd.s32 %v64, %v63
    %vm66 = vcmp.lt.s32.totalorder %v65, 8
    %v67 = vsel %vm66, %v60, 0.0
    %v68 = vmax.f32 %v67, 0.0
    %v69 = vand.u32 2147483647, %v67
    %v70 = vsub.f32 0.0, %v69
    %v71 = vmul.f32 %v70, 1.442695
    %v72 = vpow.pop %v71
    %v73 = vadd.f32 %v72, 1.0
    %v74 = vlog2.pop %v73
    %v75 = vmul.f32 %v74, 0.6931472
    %v76 = vmul.f32 -0.5, %v72
    %v77 = vadd.f32 %v76, 1.0
    %v78 = vmul.f32 %v77, %v72
    %v79 = vand.u32 2147483647, %v72
    %vm80 = vcmp.lt.f32.partialorder %v79, 0.0004427343
    %v81 = vsel %vm80, %v78, %v75
    %v82 = vadd.f32 %v68, %v81
    %v83 = vsel %vm66, %v82, 0.0
    %vm84 = vcmask 7168
    %v85 = vsel %vm84, %v83, 0.0
    %86 = vadd.xlane.f32.xlu0 %v85
    %v87 = vpop.xlane.xlu0 %86
    %v88 = vrot.slane %v87, 4
    %v89 = vadd.f32 %v87, %v88
    %v90 = vrot.slane %v89, 2
    %v91 = vadd.f32 %v89, %v90
    %v92 = vrot.slane %v91, 1
    %v93 = vadd.f32 %v91, %v92
    %s94 = vtos %v93
    %vm95 = vcmask 64512
    %v97 = vsel %vm95, %v41, 0
    %99 = vmatprep.subr.mxu0 0.0
    %100 = vmatpush1.msra.mxu0 0.0
    %101 = vmatprep.subr.mxu0 0.0
    %102 = vmatpush1.msra.mxu0 0.0
    %103 = vmatprep.subr.mxu0 0.0
    %104 = vmatpush1.msra.mxu0 0.0
    %105 = vmatprep.subr.mxu0 0.0
    %106 = vmatpush1.msra.mxu0 0.0
    %107 = vmatprep.subr.mxu0 0.0
    %108 = vmatpush1.msra.mxu0 0.0
    %109 = vmatprep.subr.mxu0 0.0
    %110 = vmatpush1.msra.mxu0 0.0
    %111 = vmatprep.subr.mxu0 0.0
    %112 = vmatpush1.msra.mxu0 0.0
    %113 = vmatprep.subr.mxu0 0.0
    %114 = vmatpush1.msra.mxu0 0.0
    %115 = vmatprep.subr.mxu0 0.0
    %116 = vmatpush1.msra.mxu0 0.0
    %117 = vmatprep.subr.mxu0 0.0
    %118 = vmatpush1.msra.mxu0 0.0
    %119 = vmatprep.subr.mxu0 0.0
    %120 = vmatpush1.msra.mxu0 0.0
    %121 = vmatprep.subr.mxu0 0.0
    %122 = vmatpush1.msra.mxu0 0.0
    %123 = vmatprep.subr.mxu0 0.0
    %124 = vmatpush1.msra.mxu0 0.0
    %125 = vmatprep.subr.mxu0 0.0
    %126 = vmatpush1.msra.mxu0 0.0
    %127 = vmatprep.subr.mxu0 0.0
    %128 = vmatpush1.msra.mxu0 0.0
    %129 = vmatprep.subr.mxu0 0.0
    %130 = vmatpush1.msra.mxu0 %v67
    %131 = vmatprep.subr.mxu0 0.0
    %132 = vmatpush2.msra.mxu0 0.0
    %133 = vmatprep.subr.mxu0 0.0
    %134 = vmatpush2.msra.mxu0 0.0
    %135 = vmatprep.subr.mxu0 0.0
    %136 = vmatpush2.msra.mxu0 0.0
    %137 = vmatprep.subr.mxu0 0.0
    %138 = vmatpush2.msra.mxu0 0.0
    %139 = vmatprep.subr.mxu0 0.0
    %140 = vmatpush2.msra.mxu0 0.0
    %141 = vmatprep.subr.mxu0 0.0
    %142 = vmatpush2.msra.mxu0 0.0
    %143 = vmatprep.subr.mxu0 0.0
    %144 = vmatpush2.msra.mxu0 0.0
    %145 = vmatprep.subr.mxu0 0.0
    %146 = vmatpush2.msra.mxu0 0.0
    %147 = vmatprep.subr.mxu0 0.0
    %148 = vmatpush2.msra.mxu0 0.0
    %149 = vmatprep.subr.mxu0 0.0
    %150 = vmatpush2.msra.mxu0 0.0
    %151 = vmatprep.subr.mxu0 0.0
    %152 = vmatpush2.msra.mxu0 0.0
    %153 = vmatprep.subr.mxu0 0.0
    %154 = vmatpush2.msra.mxu0 0.0
    %155 = vmatprep.subr.mxu0 0.0
    %156 = vmatpush2.msra.mxu0 0.0
    %157 = vmatprep.subr.mxu0 0.0
    %158 = vmatpush2.msra.mxu0 0.0
    %159 = vmatprep.subr.mxu0 0.0
    %160 = vmatpush2.msra.mxu0 0.0
    %161 = vmatprep.subr.mxu0 0.0
    %162 = vmatpush2.msra.mxu0 0.0
    %163 = vmatprep.mubr.f32.mxu0 0.0
    %164 = vmatmul.mubr.f32.gmra.mxu0 %v97
    %v165 = vpop.f32.mrf.mxu0
    %v166 = vadd.f32 0.0, %v165
    %v167 = vpop.f32.mrf.mxu0
    %168 = vdwg.mxu0
    %v169 = vstv %s94
    %v170 = vsub.f32 %v169, %v166
    %vm171 = vcmask 0
    %172 = vst.msk [vmem:[#allocation7] sm:$0x1] %vm171, %v170
    // Predicated region
    $region22: #{tpu_custom_call.1} parent=1 // pred_check
      _
    $region23: #{tpu_custom_call.1} parent=1 // pred_check_branch
      %174 = sbr.rel (0) target = $region25
    $region24: #{tpu_custom_call.1} parent=1 // pred_region
      %s176 = ssub.s32 16, 16
      %177 = vsyncadd [#allocation4], %s176
      %s179 = sshll.u32 [#allocation7], 4
      %s180 = int_to_ptr.vmem [resolvable:$true] %s179
      %182 = dma.vmem_to_hbm [thread:$0]  %s180, 16, %s3, [#allocation4]
    $region25: #{tpu_custom_call.1} parent=1 // pred_fallthru
      _
    // Predicated region
    $region26: #{tpu_custom_call.1} parent=1 // pred_check
      _
    $region27: #{tpu_custom_call.1} parent=1 // pred_check_branch
      %184 = sbr.rel (0) target = $region29
    $region28: #{tpu_custom_call.1} parent=1 // pred_region
      %185 = dma.done [#allocation4], 16
    $region29: #{tpu_custom_call.1} parent=1 // pred_fallthru
      _
    %186 = vsyncpa [#allocation3], 1
    %187 = vsyncpa [#allocation6], 1
    %188 = vsyncpa [#allocation4], 1

</llo_original>
